<compile_context>
chip_gen: v6e
topology: v6e:2x2x1
jax: 0.10.0
libtpu: 0.0.40
codegen_flags: <defaults>
</compile_context>

<pallas_src>
import jax
import jax.numpy as jnp
from jax.experimental import pallas as pl
from jax.experimental.pallas import tpu as pltpu


def _round_up(x, m):
    return ((x + m - 1) // m) * m


def _sigmoid_kernel(x_ref, o_ref):
    # One (TM, H*W) lane-dense tile per grid step: full-width vector loads and
    # stores, f32 math on the VPU/EUP, cast back to the output dtype.
    o_ref[...] = jax.nn.sigmoid(x_ref[...].astype(jnp.float32)).astype(o_ref.dtype)


def _batched_sigmoid(x2d, tm):
    """Elementwise sigmoid over a (N_pad, HW) array with (tm, HW) blocks."""
    n_pad, hw = x2d.shape
    return pl.pallas_call(
        _sigmoid_kernel,
        out_shape=jax.ShapeDtypeStruct((n_pad, hw), x2d.dtype),
        grid_spec=pltpu.PrefetchScalarGridSpec(
            num_scalar_prefetch=0,
            grid=(n_pad // tm,),
            in_specs=[pl.BlockSpec((tm, hw), lambda i: (i, 0))],
            out_specs=pl.BlockSpec((tm, hw), lambda i: (i, 0)),
        ),
        compiler_params=pltpu.CompilerParams(
            # Independent row tiles -> shard across TensorCores on v7x.
            dimension_semantics=("parallel",)),
    )(x2d)


def mask_select_sigmoid(x, labels, *, block_rows=512):
    """sigmoid(x)[arange(N), labels][:, None]  ->  (N, 1, H, W)."""
    N, C, H, W = x.shape
    HW = H * W

    if N == 0:
        # Empty detection batch: zero-size grid is not worth a kernel launch.
        return jnp.zeros((0, 1, H, W), dtype=x.dtype)

    # Guard against out-of-range labels (would index past the class axis).
    labels = jnp.clip(labels.astype(jnp.int32), 0, C - 1)

    # Per-mask class gather as a single fused XLA gather over contiguous
    # (HW,) rows — avoids N tiny (1,1,H,W) block DMAs inside the kernel.
    x3 = x.reshape(N, C, HW)                                   # metadata-only
    gathered = jnp.take_along_axis(x3, labels[:, None, None], axis=1)[:, 0, :]

    # Pad rows up to a sublane-aligned tile so the grid divides evenly; padded
    # rows are computed (garbage in -> garbage out) and sliced off below.
    tm = min(block_rows, _round_up(N, 8))
    n_pad = _round_up(N, tm)
    if n_pad != N:
        gathered = jnp.pad(gathered, ((0, n_pad - N), (0, 0)))

    probs = _batched_sigmoid(gathered, tm)                     # (n_pad, HW)
    return probs[:N].reshape(N, 1, H, W)


def mask_post_processor(x, boxes):
    """JAX equivalent of MaskPostProcessor.forward (masker=None).

    `boxes` is a list of BoxList-like dicts:
        {'bbox': (M, 4) f32, 'size': (W, H), 'fields': {'labels': (M,) i32, ...}}
    Returns a list of the same structure with an added 'mask' field of shape
    (M, 1, H, W).
    """
    if boxes:
        labels = jnp.concatenate([b['fields']['labels'] for b in boxes])
    else:
        labels = jnp.zeros((0,), dtype=jnp.int32)
    num_masks = x.shape[0]
    assert labels.shape[0] == num_masks
    mask_prob = mask_select_sigmoid(x, labels)                 # (N, 1, H, W)

    boxes_per_image = [b['bbox'].shape[0] for b in boxes]
    results = []
    start = 0
    for box, m in zip(boxes, boxes_per_image):
        prob = mask_prob[start:start + m]
        start += m
        res = {
            'bbox': box['bbox'],
            'size': box['size'],
            'mode': 'xyxy',
            'fields': dict(box['fields']),
        }
        res['fields']['mask'] = prob
        results.append(res)
    # TODO(synk): optional `masker` (paste masks into image) not implemented —
    # the reference module defaults to masker=None.
    return results


if __name__ == "__main__":
    key = jax.random.PRNGKey(0)
    k_x, k_lab, k_box0, k_box1 = jax.random.split(key, 4)

    # Two images, 3 boxes each -> N = 6 masks, C = 5 classes, 16x16 mask logits.
    N, C, H, W = 6, 5, 16, 16
    x = jax.random.normal(k_x, (N, C, H, W), dtype=jnp.float32)
    labels = jax.random.randint(k_lab, (N,), 1, C, dtype=jnp.int32)

    boxes = [
        {
            'bbox': jax.random.uniform(k_box0, (3, 4), dtype=jnp.float32) * 32.0,
            'size': (64, 64),
            'fields': {'labels': labels[:3]},
        },
        {
            'bbox': jax.random.uniform(k_box1, (3, 4), dtype=jnp.float32) * 32.0,
            'size': (64, 64),
            'fields': {'labels': labels[3:]},
        },
    ]

    results = mask_post_processor(x, boxes)
    for r in results:
        jax.block_until_ready(r['fields']['mask'])

    # Cross-check against plain-JAX reference of the PyTorch semantics.
    ref = jax.nn.sigmoid(x)[jnp.arange(N), labels][:, None]
    got = jnp.concatenate([r['fields']['mask'] for r in results], axis=0)
    assert got.shape == (N, 1, H, W)
    assert jnp.allclose(got, ref, atol=1e-6), "mismatch vs reference"

    print("KERNEL_OK")
</pallas_src>

<mosaic_0001>
module attributes {stable_mosaic.version = 11 : i64} {
  func.func @_sigmoid_kernel(%arg0: i32, %arg1: memref<8x256xf32, #tpu.memory_space<vmem>>, %arg2: memref<8x256xf32, #tpu.memory_space<vmem>>) attributes {dimension_semantics = [#tpu.dimension_semantics<parallel>], iteration_bounds = array<i64: 1>, scalar_prefetch = 0 : i64, scratch_operands = 0 : i64, tpu.core_type = #tpu.core_type<tc>, window_params = [{transform_indices = @transform_0, window_bounds = array<i64: 8, 256>}, {transform_indices = @transform_1, window_bounds = array<i64: 8, 256>}]} {
    %c0 = arith.constant 0 : index
    %c0_0 = arith.constant 0 : index
    %0 = vector.load %arg1[%c0, %c0_0] : memref<8x256xf32, #tpu.memory_space<vmem>>, vector<8x256xf32>
    %1 = arith.negf %0 : vector<8x256xf32>
    %2 = math.exp %1 : vector<8x256xf32>
    %cst = arith.constant 1.000000e+00 : f32
    %3 = vector.broadcast %cst : f32 to vector<8x256xf32>
    %4 = arith.addf %3, %2 : vector<8x256xf32>
    %5 = arith.divf %3, %4 : vector<8x256xf32>
    %c0_1 = arith.constant 0 : index
    %c0_2 = arith.constant 0 : index
    %6 = vector.load %arg2[%c0_1, %c0_2] : memref<8x256xf32, #tpu.memory_space<vmem>>, vector<8x256xf32>
    tpu.vector_store %arg2[%c0_1, %c0_2], %5 {strides = array<i32>} : memref<8x256xf32, #tpu.memory_space<vmem>>, vector<8x256xf32>,
    return
  }
  func.func @transform_0(%arg0: i32) -> (i32, i32) {
    %c0_i32 = arith.constant 0 : i32
    %c0_i32_0 = arith.constant 0 : i32
    return %arg0, %c0_i32 : i32, i32
  }
  func.func @transform_1(%arg0: i32) -> (i32, i32) {
    %c0_i32 = arith.constant 0 : i32
    %c0_i32_0 = arith.constant 0 : i32
    return %arg0, %c0_i32 : i32, i32
  }
}

</mosaic_0001>

<llo_original>
// kernel: tpu_custom_call.1
$region0: #{tpu_custom_call.1}
  #allocation0 [shape = 'u32[]', space=smem, size = 0x4, offset = 0x4, fixed_abs, tag = 'smem constant byte address 0x4 - core index']
  #allocation1 [shape = 'u32[144,128]{1,0:T(1,128)}', space=vmem, size = 0x12000, scoped, tag = 'internal scratch']
  %s0 = inlined_call_operand.hbm [shape: f32[8,256], index: 0, kind: input, shape index: {}]
  %s1 = inlined_call_operand.hbm [shape: f32[8,256], index: 1, kind: output, shape index: {}]
  %s2 = sld [smem:[#allocation0]]
  $region18: #{tpu_custom_call.1} parent=0
    _
  %s4 = ssub.s32 1, %s2
  %s5 = scalar_select 0, %s4, %s2
  $region1: #{tpu_custom_call.1} parent=0
    #allocation2 [shape = 'u8[8192]{0}', space=vmem, size = 0x2000, scoped, tag = 'input window, operand 0, single buffered']
    #allocation3 [shape = 's32[1]{0}', space=sflag, size = 0x4, scoped, tag = 'scoped memory for tpu_custom_call.1']
    #allocation4 [shape = 's32[1]{0}', space=sflag, size = 0x4, scoped, tag = 'scoped memory for tpu_custom_call.1']
    #allocation5 [shape = 'u8[8192]{0}', space=vmem, size = 0x2000, scoped, tag = 'output window, operand 0, single buffered']
    %6 = vsyncpa [#allocation3], 0
    %7 = vsyncpa [#allocation4], 0
    // Predicated region
    $region2: #{tpu_custom_call.1} parent=1 // pred_check
      _
    $region3: #{tpu_custom_call.1} parent=1 // pred_check_branch
      %9 = sbr.rel (0) target = $region5
    $region4: #{tpu_custom_call.1} parent=1 // pred_region
      %s11 = ssub.s32 256, 256
      %12 = vsyncadd [#allocation3], %s11
      %s14 = sshll.u32 [#allocation2], 4
      %s15 = int_to_ptr.vmem [resolvable:$true] %s14
      %17 = dma.hbm_to_vmem [thread:$0]  %s0, 256, %s15, [#allocation3]
    $region5: #{tpu_custom_call.1} parent=1 // pred_fallthru
      _
    // Predicated region
    $region6: #{tpu_custom_call.1} parent=1 // pred_check
      _
    $region7: #{tpu_custom_call.1} parent=1 // pred_check_branch
      %19 = sbr.rel (0) target = $region9
    $region8: #{tpu_custom_call.1} parent=1 // pred_region
      %20 = dma.done [#allocation3], 256
    $region9: #{tpu_custom_call.1} parent=1 // pred_fallthru
      _
    %v21 = vld [vmem:[#allocation2] sm:$0xff]
    %v22 = vld [vmem:[#allocation2 + $0x8] sm:$0xff]
    %v23 = vxor.u32 %v21, 2147483648
    %v24 = vxor.u32 %v22, 2147483648
    %v25 = vmul.f32 %v23, 1.442695
    %v26 = vpow.pop %v25
    %v27 = vmul.f32 %v24, 1.442695
    %v28 = vpow.pop %v27
    %v29 = vadd.f32 %v26, 1.0
    %v30 = vadd.f32 %v28, 1.0
    %v31 = vrcp.pop %v29
    %v32 = vmul.f32 1.0, %v31
    %v33 = vrcp.pop %v30
    %v34 = vmul.f32 1.0, %v33
    %35 = vst [vmem:[#allocation5] sm:$0xff] %v32
    %36 = vst [vmem:[#allocation5 + $0x8] sm:$0xff] %v34
    // Predicated region
    $region10: #{tpu_custom_call.1} parent=1 // pred_check
      _
    $region11: #{tpu_custom_call.1} parent=1 // pred_check_branch
      %38 = sbr.rel (0) target = $region13
    $region12: #{tpu_custom_call.1} parent=1 // pred_region
      %s40 = ssub.s32 256, 256
      %41 = vsyncadd [#allocation4], %s40
      %s43 = sshll.u32 [#allocation5], 4
      %s44 = int_to_ptr.vmem [resolvable:$true] %s43
      %46 = dma.vmem_to_hbm [thread:$0]  %s44, 256, %s1, [#allocation4]
    $region13: #{tpu_custom_call.1} parent=1 // pred_fallthru
      _
    // Predicated region
    $region14: #{tpu_custom_call.1} parent=1 // pred_check
      _
    $region15: #{tpu_custom_call.1} parent=1 // pred_check_branch
      %48 = sbr.rel (0) target = $region17
    $region16: #{tpu_custom_call.1} parent=1 // pred_region
      %49 = dma.done [#allocation4], 256
    $region17: #{tpu_custom_call.1} parent=1 // pred_fallthru
      _
    %50 = vsyncpa [#allocation3], 1
    %51 = vsyncpa [#allocation4], 1

</llo_original>
